<compile_context>
chip_gen: v7x
topology: tpu7x:2x2x1
jax: 0.10.0
libtpu: 0.0.40
codegen_flags: <defaults>
</compile_context>

<pallas_src>
import math
import jax
import jax.numpy as jnp
from jax.experimental import pallas as pl
from jax.experimental.pallas import tpu as pltpu


# ----------------------------- helpers ---------------------------------------
def _round_up(x, m):
    return (x + m - 1) // m * m


def _largest_divisor_leq(n, cap):
    cap = max(1, min(n, cap))
    for d in range(cap, 0, -1):
        if n % d == 0:
            return d
    return 1


def _vmem_capacity_bytes():
    try:
        info = pltpu.get_tpu_info()
        cap = int(getattr(info, "vmem_capacity_bytes", 0) or 0)
        if cap > 0:
            return cap
    except Exception:
        pass
    # Conservative fallback: assume the smallest per-TC VMEM (v7x, 64 MiB).
    return 64 * 1024 * 1024


# ----------------------------- Pallas kernel ---------------------------------
def _conv1x1_kernel(x_ref, w_ref, b_ref, o_ref):
    # x_ref: (tb, K, TP)  f32   pixel tile, pixels on the lane axis
    # w_ref: (N, K)       bf16  full weight (grid-invariant -> stays resident)
    # b_ref: (N, 1)       f32   bias column
    # o_ref: (tb, N, TP)  f32   output tile (lane-dense)
    w = w_ref[...]
    bias = b_ref[...]
    tb = x_ref.shape[0]

    def body(i, carry):
        # Cast to bf16 in-kernel (mem-bound kernel: the VPU cast hides under
        # the DMA); accumulate in f32 on the MXU.
        xi = x_ref[i].astype(w.dtype)
        acc = jnp.dot(w, xi, preferred_element_type=jnp.float32)
        o_ref[i] = (acc + bias).astype(o_ref.dtype)
        return carry

    jax.lax.fori_loop(0, tb, body, 0, unroll=(tb <= 8))


def conv1x1_pallas(x_bkp, w_nk, bias_n1, *, out_dtype=jnp.float32,
                   max_tile_pixels=65536, target_step_bytes=4 * 1024 * 1024):
    """Pixels-on-lanes 1x1 conv.

    x_bkp:   (B, K, P)  f32    (P = H*W, NCHW-contiguous spatial flatten)
    w_nk:    (N, K)     bf16
    bias_n1: (N, 1)     f32
    returns  (B, N, P)  out_dtype
    """
    B, K, P = x_bkp.shape
    N = w_nk.shape[0]
    in_bytes = x_bkp.dtype.itemsize
    out_bytes = jnp.dtype(out_dtype).itemsize
    w_bytes = w_nk.dtype.itemsize

    # Generation-aware VMEM budget for the double-buffered pixel tiles:
    # ~65% of physical VMEM (~42 MiB on v7x / ~83 MiB on v5e-v6e).
    vmem_cap = _vmem_capacity_bytes()
    budget = int(vmem_cap * 0.65)

    per_px = K * in_bytes + N * out_bytes            # VMEM bytes / pixel / buffer
    vmem_cap_px = max(128, budget // (2 * per_px))   # x2 for double buffering

    # Pixel tile: lane-dense multiple of 128, as large as fits / is useful.
    p128 = _round_up(P, 128)
    tp = min(p128, max_tile_pixels, max(128, vmem_cap_px // 128 * 128))
    tp = max(tp, 128)

    # Batch tile: when H*W alone cannot reach the ~4 MiB/step DMA target,
    # block over batch too so the ~0.35us/step overhead is amortized.
    want_px = max(tp, target_step_bytes // per_px)
    tb_want = max(1, min(B, -(-want_px // tp)))
    tb_want = min(tb_want, max(1, vmem_cap_px // tp))
    tb = _largest_divisor_leq(B, tb_want)            # keep batch grid un-ragged

    # No pad/slice: Pallas masks the ragged last pixel block (OOB reads only
    # feed output columns that are never written back).
    grid = (B // tb, pl.cdiv(P, tp))

    flops = 2 * B * P * K * N
    bytes_accessed = (B * K * P * in_bytes      # f32 input
                      + N * K * w_bytes         # bf16 weight
                      + N * 4                   # f32 bias
                      + B * N * P * out_bytes)  # output

    vmem_limit = min(vmem_cap - 16 * 1024 * 1024, budget + 8 * 1024 * 1024)
    vmem_limit = max(vmem_limit, 32 * 1024 * 1024)

    # TODO(synk): mark the weight/bias specs pipeline_mode=pl.Buffered(1)
    # (grid-invariant) once large-K configs make their double-buffer copy a
    # meaningful VMEM cost; negligible at these sizes.
    out = pl.pallas_call(
        _conv1x1_kernel,
        out_shape=jax.ShapeDtypeStruct((B, N, P), out_dtype),
        grid_spec=pltpu.PrefetchScalarGridSpec(
            num_scalar_prefetch=0,
            grid=grid,
            in_specs=[
                pl.BlockSpec((tb, K, tp), lambda b, p: (b, 0, p)),  # X tile
                pl.BlockSpec((N, K), lambda b, p: (0, 0)),          # weight
                pl.BlockSpec((N, 1), lambda b, p: (0, 0)),          # bias
            ],
            out_specs=pl.BlockSpec((tb, N, tp), lambda b, p: (b, 0, p)),
        ),
        compiler_params=pltpu.CompilerParams(
            dimension_semantics=("parallel", "parallel"),
            vmem_limit_bytes=int(vmem_limit),
        ),
        cost_estimate=pl.CostEstimate(
            flops=flops, transcendentals=0, bytes_accessed=bytes_accessed),
    )(x_bkp, w_nk, bias_n1)
    return out


# ----------------------------- Module wrapper ---------------------------------
class SimpleMetric:
    """Minimal stand-in for `Metric`: only basis_dim() matters for forward."""

    def __init__(self, n_basis_vectors=2):
        self._dim = 2 ** n_basis_vectors

    def basis_dim(self):
        return self._dim


class ConvertGATo2dPallas:
    def __init__(self, metric, in_channels, out_channels, key):
        self.metric = metric
        self.in_channels = in_channels
        self.out_channels = out_channels
        k_in = in_channels * metric.basis_dim()

        # Deterministic init matching nn.Conv2d defaults:
        # weight (Cout, Cin*basis, 1, 1), bias (Cout,), bound = 1/sqrt(fan_in).
        kw, kb = jax.random.split(key)
        bound = 1.0 / math.sqrt(k_in)
        self.weight = jax.random.uniform(
            kw, (out_channels, k_in, 1, 1), jnp.float32, -bound, bound)
        self.bias = jax.random.uniform(
            kb, (out_channels,), jnp.float32, -bound, bound)

        # Kernel-side layouts precomputed once (no per-call transpose): the
        # pixels-on-lanes matmul wants W as (N, K) bf16 and bias as (N, 1) f32.
        self.w_nk = self.weight.reshape(out_channels, k_in).astype(jnp.bfloat16)
        self.bias_col = self.bias.reshape(out_channels, 1)

    def __call__(self, x):
        # x: (B, Cin, basis_dim, H, W)
        B, Cin, Bd, H, W = x.shape
        assert Cin == self.in_channels and Bd == self.metric.basis_dim()
        K = Cin * Bd

        # PyTorch: x.view(B, Cin*basis, H, W) -- NCHW contiguous.  Flatten the
        # spatial dims onto the lane axis; NO dtype cast here (the kernel casts
        # to bf16 right before the dot, saving an extra HBM pass).
        x_bkp = x.reshape(B, K, H * W)

        out = conv1x1_pallas(x_bkp, self.w_nk, self.bias_col)

        # (B, Cout, H, W) -- already NCHW.
        return out.reshape(B, self.out_channels, H, W)


# ---------------------------------- main --------------------------------------
if __name__ == "__main__":
    key = jax.random.PRNGKey(0)
    k_x, k_params = jax.random.split(key)

    metric = SimpleMetric(n_basis_vectors=2)   # basis_dim = 4
    B, Cin, Cout, H, W = 2, 4, 8, 16, 16
    Bd = metric.basis_dim()

    x = jax.random.normal(k_x, (B, Cin, Bd, H, W), jnp.float32)

    layer = ConvertGATo2dPallas(metric, Cin, Cout, k_params)
    out = jax.block_until_ready(layer(x))

    # Reference: 1x1 conv == per-pixel channel matmul, applying the same bf16
    # rounding to x/w that the kernel applies (accumulation in f32).
    K = Cin * Bd
    x_ref = x.reshape(B, K, H, W).astype(jnp.bfloat16).astype(jnp.float32)
    w_ref = layer.w_nk.astype(jnp.float32)
    ref = (jnp.einsum("bkhw,nk->bnhw", x_ref, w_ref)
           + layer.bias[None, :, None, None])

    assert out.shape == (B, Cout, H, W)
    assert jnp.allclose(out, ref, atol=1e-4, rtol=1e-4), \
        float(jnp.max(jnp.abs(out - ref)))

    print("KERNEL_OK")
</pallas_src>

<mosaic_0001>
module attributes {stable_mosaic.version = 11 : i64} {
  func.func @_conv1x1_kernel(%arg0: i32, %arg1: i32, %arg2: memref<2x16x256xf32, #tpu.memory_space<vmem>>, %arg3: memref<8x16xbf16, #tpu.memory_space<vmem>>, %arg4: memref<8x1xf32, #tpu.memory_space<vmem>>, %arg5: memref<2x8x256xf32, #tpu.memory_space<vmem>>) attributes {dimension_semantics = [#tpu.dimension_semantics<parallel>, #tpu.dimension_semantics<parallel>], iteration_bounds = array<i64: 1, 1>, scalar_prefetch = 0 : i64, scratch_operands = 0 : i64, tpu.core_type = #tpu.core_type<tc>, window_params = [{transform_indices = @transform_0, window_bounds = array<i64: 2, 16, 256>}, {pipeline_mode = #tpu.pipeline_mode<synchronous>, transform_indices = @transform_1, window_bounds = array<i64: 8, 16>}, {pipeline_mode = #tpu.pipeline_mode<synchronous>, transform_indices = @transform_2, window_bounds = array<i64: 8, 1>}, {transform_indices = @transform_3, window_bounds = array<i64: 2, 8, 256>}]} {
    %c0 = arith.constant 0 : index
    %c0_0 = arith.constant 0 : index
    %0 = vector.load %arg3[%c0, %c0_0] : memref<8x16xbf16, #tpu.memory_space<vmem>>, vector<8x16xbf16>
    %c0_1 = arith.constant 0 : index
    %c0_2 = arith.constant 0 : index
    %1 = vector.load %arg4[%c0_1, %c0_2] : memref<8x1xf32, #tpu.memory_space<vmem>>, vector<8x1xf32>
    %c0_i32 = arith.constant 0 : i32
    %2 = arith.index_cast %c0_i32 : i32 to index
    %c0_3 = arith.constant 0 : index
    %c0_4 = arith.constant 0 : index
    %3 = vector.load %arg2[%2, %c0_3, %c0_4] : memref<2x16x256xf32, #tpu.memory_space<vmem>>, vector<1x16x256xf32>
    %4 = vector.shape_cast %3 : vector<1x16x256xf32> to vector<16x256xf32>
    %5 = arith.truncf %4 : vector<16x256xf32> to vector<16x256xbf16>
    %cst = arith.constant dense<0.000000e+00> : vector<8x256xf32>
    %6 = tpu.matmul %0, %5, %cst {dimension_numbers = #tpu.dot_dimension_numbers<[1], [0], [0], [1], [0, 0, 1, 1], [], []>} : vector<8x16xbf16>, vector<16x256xbf16>, vector<8x256xf32> -> vector<8x256xf32>
    %7 = vector.broadcast %1 : vector<8x1xf32> to vector<8x256xf32>
    %8 = arith.addf %6, %7 : vector<8x256xf32>
    %9 = arith.index_cast %c0_i32 : i32 to index
    %c0_5 = arith.constant 0 : index
    %c0_6 = arith.constant 0 : index
    %10 = vector.load %arg5[%9, %c0_5, %c0_6] : memref<2x8x256xf32, #tpu.memory_space<vmem>>, vector<1x8x256xf32>
    %11 = vector.shape_cast %10 : vector<1x8x256xf32> to vector<8x256xf32>
    %12 = vector.shape_cast %8 : vector<8x256xf32> to vector<1x8x256xf32>
    tpu.vector_store %arg5[%9, %c0_5, %c0_6], %12 {strides = array<i32>} : memref<2x8x256xf32, #tpu.memory_space<vmem>>, vector<1x8x256xf32>,
    %c1_i32 = arith.constant 1 : i32
    %13 = arith.index_cast %c1_i32 : i32 to index
    %c0_7 = arith.constant 0 : index
    %c0_8 = arith.constant 0 : index
    %14 = vector.load %arg2[%13, %c0_7, %c0_8] : memref<2x16x256xf32, #tpu.memory_space<vmem>>, vector<1x16x256xf32>
    %15 = vector.shape_cast %14 : vector<1x16x256xf32> to vector<16x256xf32>
    %16 = arith.truncf %15 : vector<16x256xf32> to vector<16x256xbf16>
    %cst_9 = arith.constant dense<0.000000e+00> : vector<8x256xf32>
    %17 = tpu.matmul %0, %16, %cst_9 {dimension_numbers = #tpu.dot_dimension_numbers<[1], [0], [0], [1], [0, 0, 1, 1], [], []>} : vector<8x16xbf16>, vector<16x256xbf16>, vector<8x256xf32> -> vector<8x256xf32>
    %18 = vector.broadcast %1 : vector<8x1xf32> to vector<8x256xf32>
    %19 = arith.addf %17, %18 : vector<8x256xf32>
    %20 = arith.index_cast %c1_i32 : i32 to index
    %c0_10 = arith.constant 0 : index
    %c0_11 = arith.constant 0 : index
    %21 = vector.load %arg5[%20, %c0_10, %c0_11] : memref<2x8x256xf32, #tpu.memory_space<vmem>>, vector<1x8x256xf32>
    %22 = vector.shape_cast %21 : vector<1x8x256xf32> to vector<8x256xf32>
    %23 = vector.shape_cast %19 : vector<8x256xf32> to vector<1x8x256xf32>
    tpu.vector_store %arg5[%20, %c0_10, %c0_11], %23 {strides = array<i32>} : memref<2x8x256xf32, #tpu.memory_space<vmem>>, vector<1x8x256xf32>,
    %c2_i32 = arith.constant 2 : i32
    return
  }
  func.func @transform_0(%arg0: i32, %arg1: i32) -> (i32, i32, i32) {
    %c0_i32 = arith.constant 0 : i32
    %c0_i32_0 = arith.constant 0 : i32
    return %arg0, %c0_i32, %arg1 : i32, i32, i32
  }
  func.func @transform_1(%arg0: i32, %arg1: i32) -> (i32, i32) {
    %c0_i32 = arith.constant 0 : i32
    %c0_i32_0 = arith.constant 0 : i32
    %c0_i32_1 = arith.constant 0 : i32
    return %c0_i32, %c0_i32_0 : i32, i32
  }
  func.func @transform_2(%arg0: i32, %arg1: i32) -> (i32, i32) {
    %c0_i32 = arith.constant 0 : i32
    %c0_i32_0 = arith.constant 0 : i32
    %c0_i32_1 = arith.constant 0 : i32
    return %c0_i32, %c0_i32_0 : i32, i32
  }
  func.func @transform_3(%arg0: i32, %arg1: i32) -> (i32, i32, i32) {
    %c0_i32 = arith.constant 0 : i32
    %c0_i32_0 = arith.constant 0 : i32
    return %arg0, %c0_i32, %arg1 : i32, i32, i32
  }
}

</mosaic_0001>

<llo_original>
// kernel: tpu_custom_call.1
$region0: #{tpu_custom_call.1}
  #allocation0 [shape = 'u32[]', space=smem, size = 0x4, offset = 0x4, fixed_abs, tag = 'smem constant byte address 0x4 - core index']
  #allocation1 [shape = 'u32[144,128]{1,0:T(1,128)}', space=vmem, size = 0x12000, scoped, tag = 'internal scratch']
  %s0 = inlined_call_operand.hbm [shape: f32[2,16,256], index: 0, kind: input, shape index: {}]
  %s1 = inlined_call_operand.vmem [shape: bf16[8,16], index: 1, kind: input, shape index: {}]
  %s2 = inlined_call_operand.vmem [shape: f32[8,1], index: 2, kind: input, shape index: {}]
  %s3 = inlined_call_operand.hbm [shape: f32[2,8,256], index: 3, kind: output, shape index: {}]
  %s4 = sld [smem:[#allocation0]]
  $region26: #{tpu_custom_call.1} parent=0
    _
  %s6 = ssub.s32 1, %s4
  %s7 = scalar_select 0, %s6, %s4
  $region1: #{tpu_custom_call.1} parent=0
    #allocation2 [shape = 'u8[32768]{0}', space=vmem, size = 0x8000, scoped, tag = 'input window, operand 0, single buffered']
    #allocation3 [shape = 's32[1]{0}', space=sflag, size = 0x4, scoped, tag = 'scoped memory for tpu_custom_call.1']
    #allocation4 [shape = 's32[1]{0}', space=sflag, size = 0x4, scoped, tag = 'scoped memory for tpu_custom_call.1']
    #allocation5 [shape = 'u8[16384]{0}', space=vmem, size = 0x4000, scoped, tag = 'output window, operand 0, single buffered']
    %8 = vsyncpa [#allocation3], 0
    %9 = vsyncpa [#allocation4], 0
    // Predicated region
    $region2: #{tpu_custom_call.1} parent=1 // pred_check
      _
    $region3: #{tpu_custom_call.1} parent=1 // pred_check_branch
      %11 = sbr.rel (0) target = $region5
    $region4: #{tpu_custom_call.1} parent=1 // pred_region
      %s13 = ssub.s32 1024, 1024
      %14 = vsyncadd [#allocation3], %s13
      %s15 = sshll.u32 [#allocation2], 4
      %s16 = int_to_ptr.vmem [resolvable:$true] %s15
      %21 = dma.hbm_to_vmem [thread:$0]  %s0, 1024, %s16, [#allocation3], 256, 256, 16
    $region5: #{tpu_custom_call.1} parent=1 // pred_fallthru
      _
    // Predicated region
    $region6: #{tpu_custom_call.1} parent=1 // pred_check
      _
    $region7: #{tpu_custom_call.1} parent=1 // pred_check_branch
      %23 = sbr.rel (0) target = $region9
    $region8: #{tpu_custom_call.1} parent=1 // pred_region
      _
    $region9: #{tpu_custom_call.1} parent=1 // pred_fallthru
      _
    // Predicated region
    $region10: #{tpu_custom_call.1} parent=1 // pred_check
      _
    $region11: #{tpu_custom_call.1} parent=1 // pred_check_branch
      %25 = sbr.rel (0) target = $region13
    $region12: #{tpu_custom_call.1} parent=1 // pred_region
      _
    $region13: #{tpu_custom_call.1} parent=1 // pred_fallthru
      _
    // Predicated region
    $region14: #{tpu_custom_call.1} parent=1 // pred_check
      _
    $region15: #{tpu_custom_call.1} parent=1 // pred_check_branch
      %27 = sbr.rel (0) target = $region17
    $region16: #{tpu_custom_call.1} parent=1 // pred_region
      %28 = dma.done [#allocation3], 1024
    $region17: #{tpu_custom_call.1} parent=1 // pred_fallthru
      _
    %v30 = vld [vmem:[%s1] sm:$0xf]
    %v31 = vld [vmem:[%s2] sm:$0xff]
    %v32 = vld [vmem:[#allocation2] sm:$0xff]
    %v33 = vld [vmem:[#allocation2 + $0x8] sm:$0xff]
    %v34 = vld [vmem:[#allocation2 + $0x10] sm:$0xff]
    %v35 = vld [vmem:[#allocation2 + $0x18] sm:$0xff]
    %v36 = vpack.c.bf16 %v34, %v32
    %v37 = vpack.c.bf16 %v35, %v33
    %39 = vset.pattern.permute.xlu0 0
    %40 = vperm.xlu0 %39, %v31
    %v41 = vpop.permute.xlu0 %40
    %vm43 = vcmask 130048
    %v45 = vsel %vm43, %v30, 0
    %47 = vmatprep.subr.bf16.mxu0 %v37
    %48 = vmatpush1.bf16.msra.mxu0 %v36
    %49 = vmatprep.subr.bf16.mxu0 0
    %50 = vmatpush1.bf16.msra.mxu0 0
    %51 = vmatprep.subr.bf16.mxu0 0
    %52 = vmatpush1.bf16.msra.mxu0 0
    %53 = vmatprep.subr.bf16.mxu0 0
    %54 = vmatpush1.bf16.msra.mxu0 0
    %55 = vmatprep.subr.bf16.mxu0 0
    %56 = vmatpush1.bf16.msra.mxu0 0
    %57 = vmatprep.subr.bf16.mxu0 0
    %58 = vmatpush1.bf16.msra.mxu0 0
    %59 = vmatprep.subr.bf16.mxu0 0
    %60 = vmatpush1.bf16.msra.mxu0 0
    %61 = vmatprep.subr.bf16.mxu0 0
    %62 = vmatpush1.bf16.msra.mxu0 0
    %63 = vmatprep.subr.bf16.mxu0 0
    %64 = vmatpush1.bf16.msra.mxu0 0
    %65 = vmatprep.subr.bf16.mxu0 0
    %66 = vmatpush1.bf16.msra.mxu0 0
    %67 = vmatprep.subr.bf16.mxu0 0
    %68 = vmatpush1.bf16.msra.mxu0 0
    %69 = vmatprep.subr.bf16.mxu0 0
    %70 = vmatpush1.bf16.msra.mxu0 0
    %71 = vmatprep.subr.bf16.mxu0 0
    %72 = vmatpush1.bf16.msra.mxu0 0
    %73 = vmatprep.subr.bf16.mxu0 0
    %74 = vmatpush1.bf16.msra.mxu0 0
    %75 = vmatprep.subr.bf16.mxu0 0
    %76 = vmatpush1.bf16.msra.mxu0 0
    %77 = vmatprep.subr.bf16.mxu0 0
    %78 = vmatpush1.bf16.msra.mxu0 0
    %79 = vmatprep.mubr.bf16.mxu0 0
    %80 = vmatmul.mubr.bf16.gmra.mrb[0].mxu0 %v45
    %v81 = vpop.f32.mrb[0].mxu0
    %v82 = vadd.f32 %v41, %v81
    %v83 = vpop.f32.mrb[0].mxu0
    %v84 = vadd.f32 %v41, %v83
    %v85 = vpop.f32.mrb[0].mxu0
    %v86 = vpop.f32.mrb[0].mxu0
    %87 = vdwg.mxu0
    %88 = vst [vmem:[#allocation5] sm:$0xff] %v82
    %89 = vst [vmem:[#allocation5 + $0x8] sm:$0xff] %v84
    %s90 = scalar_lea.vmem [#allocation2], 32
    %v91 = vld [vmem:[%s90] sm:$0xff]
    %v92 = vld [vmem:[%s90 + $0x8] sm:$0xff]
    %v93 = vld [vmem:[%s90 + $0x10] sm:$0xff]
    %v94 = vld [vmem:[%s90 + $0x18] sm:$0xff]
    %v95 = vpack.c.bf16 %v93, %v91
    %v96 = vpack.c.bf16 %v94, %v92
    %97 = vmatprep.subr.bf16.mxu0 %v96
    %98 = vmatpush1.bf16.msra.mxu0 %v95
    %99 = vmatprep.subr.bf16.mxu0 0
    %100 = vmatpush1.bf16.msra.mxu0 0
    %101 = vmatprep.subr.bf16.mxu0 0
    %102 = vmatpush1.bf16.msra.mxu0 0
    %103 = vmatprep.subr.bf16.mxu0 0
    %104 = vmatpush1.bf16.msra.mxu0 0
    %105 = vmatprep.subr.bf16.mxu0 0
    %106 = vmatpush1.bf16.msra.mxu0 0
    %107 = vmatprep.subr.bf16.mxu0 0
    %108 = vmatpush1.bf16.msra.mxu0 0
    %109 = vmatprep.subr.bf16.mxu0 0
    %110 = vmatpush1.bf16.msra.mxu0 0
    %111 = vmatprep.subr.bf16.mxu0 0
    %112 = vmatpush1.bf16.msra.mxu0 0
    %113 = vmatprep.subr.bf16.mxu0 0
    %114 = vmatpush1.bf16.msra.mxu0 0
    %115 = vmatprep.subr.bf16.mxu0 0
    %116 = vmatpush1.bf16.msra.mxu0 0
    %117 = vmatprep.subr.bf16.mxu0 0
    %118 = vmatpush1.bf16.msra.mxu0 0
    %119 = vmatprep.subr.bf16.mxu0 0
    %120 = vmatpush1.bf16.msra.mxu0 0
    %121 = vmatprep.subr.bf16.mxu0 0
    %122 = vmatpush1.bf16.msra.mxu0 0
    %123 = vmatprep.subr.bf16.mxu0 0
    %124 = vmatpush1.bf16.msra.mxu0 0
    %125 = vmatprep.subr.bf16.mxu0 0
    %126 = vmatpush1.bf16.msra.mxu0 0
    %127 = vmatprep.subr.bf16.mxu0 0
    %128 = vmatpush1.bf16.msra.mxu0 0
    %129 = vmatprep.mubr.bf16.mxu0 0
    %130 = vmatmul.mubr.bf16.gmra.mrb[0].mxu0 %v45
    %v131 = vpop.f32.mrb[0].mxu0
    %v132 = vadd.f32 %v41, %v131
    %v133 = vpop.f32.mrb[0].mxu0
    %v134 = vadd.f32 %v41, %v133
    %v135 = vpop.f32.mrb[0].mxu0
    %v136 = vpop.f32.mrb[0].mxu0
    %137 = vdwg.mxu0
    %s138 = scalar_lea.vmem [#allocation5], 16
    %139 = vst [vmem:[%s138] sm:$0xff] %v132
    %140 = vst [vmem:[%s138 + $0x8] sm:$0xff] %v134
    // Predicated region
    $region18: #{tpu_custom_call.1} parent=1 // pred_check
      _
    $region19: #{tpu_custom_call.1} parent=1 // pred_check_branch
      %142 = sbr.rel (0) target = $region21
    $region20: #{tpu_custom_call.1} parent=1 // pred_region
      %s144 = ssub.s32 512, 512
      %145 = vsyncadd [#allocation4], %s144
      %s146 = sshll.u32 [#allocation5], 4
      %s147 = int_to_ptr.vmem [resolvable:$true] %s146
      %152 = dma.vmem_to_hbm [thread:$0]  %s147, 512, %s3, [#allocation4], 256, 256, 16
    $region21: #{tpu_custom_call.1} parent=1 // pred_fallthru
      _
    // Predicated region
    $region22: #{tpu_custom_call.1} parent=1 // pred_check
      _
    $region23: #{tpu_custom_call.1} parent=1 // pred_check_branch
      %154 = sbr.rel (0) target = $region25
    $region24: #{tpu_custom_call.1} parent=1 // pred_region
      %155 = dma.done [#allocation4], 512
    $region25: #{tpu_custom_call.1} parent=1 // pred_fallthru
      _
    %156 = vsyncpa [#allocation3], 1
    %157 = vsyncpa [#allocation4], 1

</llo_original>
